<compile_context>
chip_gen: v7x
topology: tpu7x:2x2x1
jax: 0.10.0
libtpu: 0.0.40
codegen_flags: <defaults>
</compile_context>

<pallas_src>
import functools

import jax
import jax.numpy as jnp
from jax.experimental import pallas as pl
from jax.experimental.pallas import tpu as pltpu


def _pick_row_tile(nrows, lane_width, *, target_steps=4, max_block_bytes=2 << 20):
    """Rows per block.

    Picks a multiple of 8 (f32 sublane tiling) that divides `nrows`, giving
    >= 2 grid steps (v7x megacore has 2 TensorCores) and ~`target_steps` steps
    for DMA/compute pipelining, while one block stays under `max_block_bytes`
    (live VMEM ~= (input + output) * double-buffer = 4 * block bytes).
    """
    if nrows % 8 != 0 or nrows < 16:
        return nrows
    r = nrows
    for steps in range(target_steps, 1, -1):
        if nrows % steps == 0 and (nrows // steps) % 8 == 0:
            r = nrows // steps
            break
    # Shrink further if a single block would blow the VMEM budget (large H*W).
    while r > 8 and r * lane_width * 4 > max_block_bytes:
        half = r // 2
        if half % 8 != 0 or nrows % half != 0:
            break
        r = half
    return r


def _grouped_convT1x1_silu_kernel(x_ref, w_ref, b_ref, o_ref, *, s, cpg):
    # x_ref: (R, cpg*s)       row r: one group's cpg input channels, spatial-fast
    # w_ref: (cpg, cpg, R, 1) w_ref[i, j] = W[in i, out j] of each row's group
    # b_ref: (cpg, R, 1)      bias, same split
    # o_ref: (R, cpg*s)       output, same layout as the input
    x = x_ref[...]
    xs = [x[:, i * s:(i + 1) * s] for i in range(cpg)]     # aligned lane slices
    for j in range(cpg):                                    # static unroll (cpg=2)
        y = b_ref[j]                                        # (R, 1) lane-broadcast
        for i in range(cpg):
            y = y + w_ref[i, j] * xs[i]                     # pure VPU FMA
        o_ref[:, j * s:(j + 1) * s] = y * jax.nn.sigmoid(y)  # v1 * sigmoid(v1)


def conv_transpose_1x1_silu(x, w_pt, b, groups, *, target_steps=4,
                            max_block_bytes=2 << 20):
    """x: (N, C, H, W) f32; w_pt: PyTorch ConvTranspose2d weight (C, C//G, 1, 1);
    b: (C,).  Returns (N, C, H-2, W-2): SiLU-gated grouped 1x1 conv-transpose
    with padding=1 (which crops one pixel per border)."""
    N, C, H, W = x.shape
    G = groups
    assert C % G == 0, "in_channels must be divisible by groups"
    cpg = C // G
    assert H > 2 and W > 2, "padding=1 transposed conv needs H, W > 2"
    S = H * W
    NG = N * G
    L = cpg * S

    # Activations: copy-free view.  Row r = n*G + g holds channels
    # [g*cpg, ..., g*cpg + cpg - 1] of image n, each spanning S lanes.
    x2 = x.astype(jnp.float32).reshape(NG, L)

    # Weights / bias: tiny; reshuffle into per-row broadcast columns.
    # PyTorch layout (C_in, C_out//G, 1, 1): W_pt[g*cpg + i, j] = w[g, i, j].
    w_g = w_pt.astype(jnp.float32).reshape(G, cpg, cpg)
    w_rows = jnp.tile(w_g, (N, 1, 1))                               # (NG, cpg, cpg)
    w4 = jnp.transpose(w_rows, (1, 2, 0)).reshape(cpg, cpg, NG, 1)
    b_rows = jnp.tile(b.astype(jnp.float32).reshape(G, cpg), (N, 1))  # (NG, cpg)
    b3 = jnp.transpose(b_rows, (1, 0)).reshape(cpg, NG, 1)

    r_tile = _pick_row_tile(NG, L, target_steps=target_steps,
                            max_block_bytes=max_block_bytes)
    grid = (NG // r_tile,)

    out2 = pl.pallas_call(
        functools.partial(_grouped_convT1x1_silu_kernel, s=S, cpg=cpg),
        out_shape=jax.ShapeDtypeStruct((NG, L), jnp.float32),
        grid=grid,
        in_specs=[
            pl.BlockSpec((r_tile, L), lambda r: (r, 0)),
            pl.BlockSpec((cpg, cpg, r_tile, 1), lambda r: (0, 0, r, 0)),
            pl.BlockSpec((cpg, r_tile, 1), lambda r: (0, r, 0)),
        ],
        out_specs=pl.BlockSpec((r_tile, L), lambda r: (r, 0)),
        compiler_params=pltpu.CompilerParams(
            dimension_semantics=("parallel",)),
    )(x2, w4, b3)

    # Free reshape back to NCHW, then the single unavoidable copy: the 1-pixel
    # border crop implied by padding=1 on the transposed conv.
    out = out2.reshape(N, C, H, W)
    return out[:, :, 1:H - 1, 1:W - 1]


def _reference(x, w_pt, b, groups):
    """Pure-JAX (exact f32, element-wise) reference of the same op."""
    N, C, H, W = x.shape
    G = groups
    cpg = C // G
    w = w_pt.reshape(G, cpg, cpg)                           # w[g, ic, oc]
    xg = x.reshape(N, G, cpg, H, W)
    y = jnp.sum(w[None, :, :, :, None, None] * xg[:, :, :, None, :, :], axis=2)
    y = y.reshape(N, C, H, W) + b[None, :, None, None]
    y = y * jax.nn.sigmoid(y)
    return y[:, :, 1:H - 1, 1:W - 1]


if __name__ == "__main__":
    key = jax.random.PRNGKey(0)
    k_x, k_w, k_b = jax.random.split(key, 3)

    # TODO(synk): original spec (65 channels, groups=32) is unconstructible in
    # PyTorch; using C=64, groups=32 to keep the grouped semantics valid.
    N, C, H, W = 2, 64, 16, 16
    G = 32
    cpg = C // G

    x = jax.random.normal(k_x, (N, C, H, W), dtype=jnp.float32)
    # PyTorch-like init: uniform(-1/sqrt(fan), 1/sqrt(fan)), fan = cpg * 1 * 1.
    bound = 1.0 / (cpg ** 0.5)
    # Real PyTorch ConvTranspose2d weight layout: (C_in, C_out // groups, kH, kW)
    w_pt = jax.random.uniform(k_w, (C, cpg, 1, 1), dtype=jnp.float32,
                              minval=-bound, maxval=bound)
    b = jax.random.uniform(k_b, (C,), dtype=jnp.float32,
                           minval=-bound, maxval=bound)

    out = conv_transpose_1x1_silu(x, w_pt, b, G)
    out = jax.block_until_ready(out)

    ref = _reference(x, w_pt, b, G)
    assert out.shape == (N, C, H - 2, W - 2), out.shape
    assert jnp.allclose(out, ref, atol=1e-5, rtol=1e-5), "mismatch vs reference"

    print("KERNEL_OK")
</pallas_src>

<mosaic_0001>
module attributes {stable_mosaic.version = 11 : i64} {
  func.func @_grouped_convT1x1_silu_kernel(%arg0: i32, %arg1: memref<16x512xf32, #tpu.memory_space<vmem>>, %arg2: memref<2x2x16x1xf32, #tpu.memory_space<vmem>>, %arg3: memref<2x16x1xf32, #tpu.memory_space<vmem>>, %arg4: memref<16x512xf32, #tpu.memory_space<vmem>>) attributes {dimension_semantics = [#tpu.dimension_semantics<parallel>], iteration_bounds = array<i64: 4>, scalar_prefetch = 0 : i64, scratch_operands = 0 : i64, tpu.core_type = #tpu.core_type<tc>, window_params = [{transform_indices = @transform_0, window_bounds = array<i64: 16, 512>}, {transform_indices = @transform_1, window_bounds = array<i64: 2, 2, 16, 1>}, {transform_indices = @transform_2, window_bounds = array<i64: 2, 16, 1>}, {transform_indices = @transform_3, window_bounds = array<i64: 16, 512>}]} {
    %c0 = arith.constant 0 : index
    %c0_0 = arith.constant 0 : index
    %0 = vector.load %arg1[%c0, %c0_0] : memref<16x512xf32, #tpu.memory_space<vmem>>, vector<16x512xf32>
    %1 = vector.extract_strided_slice %0 {offsets = [0, 0], sizes = [16, 256], strides = [1, 1]} : vector<16x512xf32> to vector<16x256xf32>
    %2 = vector.extract_strided_slice %0 {offsets = [0, 256], sizes = [16, 256], strides = [1, 1]} : vector<16x512xf32> to vector<16x256xf32>
    %c0_1 = arith.constant 0 : index
    %c0_2 = arith.constant 0 : index
    %c0_3 = arith.constant 0 : index
    %3 = vector.load %arg3[%c0_1, %c0_2, %c0_3] : memref<2x16x1xf32, #tpu.memory_space<vmem>>, vector<1x16x1xf32>
    %4 = vector.shape_cast %3 : vector<1x16x1xf32> to vector<16x1xf32>
    %c0_4 = arith.constant 0 : index
    %c0_5 = arith.constant 0 : index
    %c0_6 = arith.constant 0 : index
    %c0_7 = arith.constant 0 : index
    %5 = vector.load %arg2[%c0_4, %c0_5, %c0_6, %c0_7] : memref<2x2x16x1xf32, #tpu.memory_space<vmem>>, vector<1x1x16x1xf32>
    %6 = vector.shape_cast %5 : vector<1x1x16x1xf32> to vector<16x1xf32>
    %7 = vector.broadcast %6 : vector<16x1xf32> to vector<16x256xf32>
    %8 = arith.mulf %7, %1 : vector<16x256xf32>
    %9 = vector.broadcast %4 : vector<16x1xf32> to vector<16x256xf32>
    %10 = arith.addf %9, %8 : vector<16x256xf32>
    %c1 = arith.constant 1 : index
    %c0_8 = arith.constant 0 : index
    %c0_9 = arith.constant 0 : index
    %c0_10 = arith.constant 0 : index
    %11 = vector.load %arg2[%c1, %c0_8, %c0_9, %c0_10] : memref<2x2x16x1xf32, #tpu.memory_space<vmem>>, vector<1x1x16x1xf32>
    %12 = vector.shape_cast %11 : vector<1x1x16x1xf32> to vector<16x1xf32>
    %13 = vector.broadcast %12 : vector<16x1xf32> to vector<16x256xf32>
    %14 = arith.mulf %13, %2 : vector<16x256xf32>
    %15 = arith.addf %10, %14 : vector<16x256xf32>
    %16 = arith.negf %15 : vector<16x256xf32>
    %17 = math.exp %16 : vector<16x256xf32>
    %cst = arith.constant 1.000000e+00 : f32
    %18 = vector.broadcast %cst : f32 to vector<16x256xf32>
    %19 = arith.addf %18, %17 : vector<16x256xf32>
    %20 = arith.divf %18, %19 : vector<16x256xf32>
    %21 = arith.mulf %15, %20 : vector<16x256xf32>
    %c0_11 = arith.constant 0 : index
    %c0_12 = arith.constant 0 : index
    %22 = vector.load %arg4[%c0_11, %c0_12] : memref<16x512xf32, #tpu.memory_space<vmem>>, vector<16x256xf32>
    tpu.vector_store %arg4[%c0_11, %c0_12], %21 {strides = array<i32>} : memref<16x512xf32, #tpu.memory_space<vmem>>, vector<16x256xf32>,
    %c1_13 = arith.constant 1 : index
    %c0_14 = arith.constant 0 : index
    %c0_15 = arith.constant 0 : index
    %23 = vector.load %arg3[%c1_13, %c0_14, %c0_15] : memref<2x16x1xf32, #tpu.memory_space<vmem>>, vector<1x16x1xf32>
    %24 = vector.shape_cast %23 : vector<1x16x1xf32> to vector<16x1xf32>
    %c0_16 = arith.constant 0 : index
    %c1_17 = arith.constant 1 : index
    %c0_18 = arith.constant 0 : index
    %c0_19 = arith.constant 0 : index
    %25 = vector.load %arg2[%c0_16, %c1_17, %c0_18, %c0_19] : memref<2x2x16x1xf32, #tpu.memory_space<vmem>>, vector<1x1x16x1xf32>
    %26 = vector.shape_cast %25 : vector<1x1x16x1xf32> to vector<16x1xf32>
    %27 = vector.broadcast %26 : vector<16x1xf32> to vector<16x256xf32>
    %28 = arith.mulf %27, %1 : vector<16x256xf32>
    %29 = vector.broadcast %24 : vector<16x1xf32> to vector<16x256xf32>
    %30 = arith.addf %29, %28 : vector<16x256xf32>
    %c1_20 = arith.constant 1 : index
    %c1_21 = arith.constant 1 : index
    %c0_22 = arith.constant 0 : index
    %c0_23 = arith.constant 0 : index
    %31 = vector.load %arg2[%c1_20, %c1_21, %c0_22, %c0_23] : memref<2x2x16x1xf32, #tpu.memory_space<vmem>>, vector<1x1x16x1xf32>
    %32 = vector.shape_cast %31 : vector<1x1x16x1xf32> to vector<16x1xf32>
    %33 = vector.broadcast %32 : vector<16x1xf32> to vector<16x256xf32>
    %34 = arith.mulf %33, %2 : vector<16x256xf32>
    %35 = arith.addf %30, %34 : vector<16x256xf32>
    %36 = arith.negf %35 : vector<16x256xf32>
    %37 = math.exp %36 : vector<16x256xf32>
    %cst_24 = arith.constant 1.000000e+00 : f32
    %38 = vector.broadcast %cst_24 : f32 to vector<16x256xf32>
    %39 = arith.addf %38, %37 : vector<16x256xf32>
    %40 = arith.divf %38, %39 : vector<16x256xf32>
    %41 = arith.mulf %35, %40 : vector<16x256xf32>
    %c0_25 = arith.constant 0 : index
    %c256 = arith.constant 256 : index
    %42 = vector.load %arg4[%c0_25, %c256] : memref<16x512xf32, #tpu.memory_space<vmem>>, vector<16x256xf32>
    tpu.vector_store %arg4[%c0_25, %c256], %41 {strides = array<i32>} : memref<16x512xf32, #tpu.memory_space<vmem>>, vector<16x256xf32>,
    return
  }
  func.func @transform_0(%arg0: i32) -> (i32, i32) {
    %c0_i32 = arith.constant 0 : i32
    %c0_i32_0 = arith.constant 0 : i32
    return %arg0, %c0_i32 : i32, i32
  }
  func.func @transform_1(%arg0: i32) -> (i32, i32, i32, i32) {
    %c0_i32 = arith.constant 0 : i32
    %c0_i32_0 = arith.constant 0 : i32
    %c0_i32_1 = arith.constant 0 : i32
    %c0_i32_2 = arith.constant 0 : i32
    return %c0_i32, %c0_i32_0, %arg0, %c0_i32_1 : i32, i32, i32, i32
  }
  func.func @transform_2(%arg0: i32) -> (i32, i32, i32) {
    %c0_i32 = arith.constant 0 : i32
    %c0_i32_0 = arith.constant 0 : i32
    %c0_i32_1 = arith.constant 0 : i32
    return %c0_i32, %arg0, %c0_i32_0 : i32, i32, i32
  }
  func.func @transform_3(%arg0: i32) -> (i32, i32) {
    %c0_i32 = arith.constant 0 : i32
    %c0_i32_0 = arith.constant 0 : i32
    return %arg0, %c0_i32 : i32, i32
  }
}

</mosaic_0001>

<llo_original>
// kernel: tpu_custom_call.1
$region0: #{tpu_custom_call.1}
  #allocation0 [shape = 'u32[]', space=smem, size = 0x4, offset = 0x4, fixed_abs, tag = 'smem constant byte address 0x4 - core index']
  #allocation1 [shape = 'u32[144,128]{1,0:T(1,128)}', space=vmem, size = 0x12000, scoped, tag = 'internal scratch']
  %s0 = inlined_call_operand.vmem [shape: f32[64,512], index: 0, kind: input, shape index: {}]
  %s1 = inlined_call_operand.vmem [shape: f32[2,2,64,1], index: 1, kind: input, shape index: {}]
  %s2 = inlined_call_operand.vmem [shape: f32[2,64,1], index: 2, kind: input, shape index: {}]
  %s3 = inlined_call_operand.hbm [shape: f32[64,512], index: 3, kind: output, shape index: {}]
  %s4 = sld [smem:[#allocation0]]
  $region121: #{tpu_custom_call.1} parent=0
    _
  %s6 = ssub.s32 1, %s4
  %s7 = scalar_select 0, %s6, %s4
  $region1: #{tpu_custom_call.1} parent=0
    #allocation2 [shape = 'u8[65536]{0}', space=vmem, size = 0x10000, scoped, tag = 'input window, operand 1']
    #allocation3 [shape = 'u8[32768]{0}', space=vmem, size = 0x8000, scoped, tag = 'input window, operand 2']
    #allocation4 [shape = 'u8[65536]{0}', space=vmem, size = 0x10000, scoped, tag = 'output window, operand 0']
    #allocation5 [shape = 's32[2]{0}', space=sflag, size = 0x8, scoped, tag = 'scoped memory for tpu_custom_call.1']
    %8 = vsyncpa [#allocation5], 0
    %s9 = scalar_lea.sflag [#allocation5], 1
    %10 = vsyncpa %s9, 0
    loop: start=0, step=1, limit=6
    $region2: #{tpu_custom_call.1} parent=1 // loop_pre_header
      _
    $region3: #{tpu_custom_call.1} parent=1 // loop_header
      %s12 = sphi 0, %s16
      %p13 = scmp.ge.s32.totalorder %s12, 6
      %s22 = sphi 0, %s24
      %s25 = sphi 0, %s22
      %s26 = sphi 0, %s25
      %s42 = sphi 0, %s26
      %s48 = sphi 0, %s50
      %s51 = sphi 0, %s48
      %s52 = sphi 0, %s51
      %s68 = sphi 0, %s52
      %s74 = sphi 0, %s76
      %s77 = sphi 0, %s74
      %s78 = sphi 0, %s77
      %s94 = sphi 0, %s78
      %s100 = sphi 0, %s102
      %s103 = sphi 0, %s100
      %s104 = sphi 0, %s103
      %s120 = sphi 0, %s104
    $region4: #{tpu_custom_call.1} parent=1 // loop_header_branch
      %15 = sbr.rel (%p13) target = $region8
    $region5: #{tpu_custom_call.1} parent=1 // loop_body
      %s17 = ssub.s32 %s12, 1
      %s18 = ssub.s32 %s12, 2
      %s19 = sadd.s32 %s12, 1
      %s20 = ssub.s32 %s12, %s19
      %p21 = scmp.eq.s32.totalorder %s20, 0
      %s23 = sadd.s32 %s22, 1
      %s24 = scalar_select %p21, %s22, %s23
      %p27 = pneg %p21
      %p28 = scmp.eq.s32.totalorder %s12, 3
      %p29 = por %p27, %p28
      %p30 = scmp.ne.s32.totalorder %s22, %s25
      %p31 = scmp.eq.s32.totalorder %s12, 0
      %p32 = por %p30, %p31
      %p33 = scmp.ne.s32.totalorder %s22, %s25
      %p34 = scmp.eq.s32.totalorder %s17, 3
      %p35 = por %p33, %p34
      %p36 = scmp.ne.s32.totalorder %s25, %s26
      %p37 = scmp.eq.s32.totalorder %s17, 0
      %p38 = por %p36, %p37
      %p39 = scmp.ne.s32.totalorder %s25, %s26
      %p40 = scmp.eq.s32.totalorder %s18, 3
      %p41 = por %p39, %p40
      %p43 = scmp.ne.s32.totalorder %s26, %s42
      %p44 = scmp.eq.s32.totalorder %s18, 0
      %p45 = por %p43, %p44
      %s46 = ssub.s32 %s12, %s19
      %p47 = scmp.eq.s32.totalorder %s46, 0
      %s49 = sadd.s32 %s48, 1
      %s50 = scalar_select %p47, %s48, %s49
      %p53 = pneg %p47
      %p54 = scmp.eq.s32.totalorder %s12, 3
      %p55 = por %p53, %p54
      %p56 = scmp.ne.s32.totalorder %s48, %s51
      %p57 = scmp.eq.s32.totalorder %s12, 0
      %p58 = por %p56, %p57
      %p59 = scmp.ne.s32.totalorder %s48, %s51
      %p60 = scmp.eq.s32.totalorder %s17, 3
      %p61 = por %p59, %p60
      %p62 = scmp.ne.s32.totalorder %s51, %s52
      %p63 = scmp.eq.s32.totalorder %s17, 0
      %p64 = por %p62, %p63
      %p65 = scmp.ne.s32.totalorder %s51, %s52
      %p66 = scmp.eq.s32.totalorder %s18, 3
      %p67 = por %p65, %p66
      %p69 = scmp.ne.s32.totalorder %s52, %s68
      %p70 = scmp.eq.s32.totalorder %s18, 0
      %p71 = por %p69, %p70
      %s72 = ssub.s32 %s12, %s19
      %p73 = scmp.eq.s32.totalorder %s72, 0
      %s75 = sadd.s32 %s74, 1
      %s76 = scalar_select %p73, %s74, %s75
      %p79 = pneg %p73
      %p80 = scmp.eq.s32.totalorder %s12, 3
      %p81 = por %p79, %p80
      %p82 = scmp.ne.s32.totalorder %s74, %s77
      %p83 = scmp.eq.s32.totalorder %s12, 0
      %p84 = por %p82, %p83
      %p85 = scmp.ne.s32.totalorder %s74, %s77
      %p86 = scmp.eq.s32.totalorder %s17, 3
      %p87 = por %p85, %p86
      %p88 = scmp.ne.s32.totalorder %s77, %s78
      %p89 = scmp.eq.s32.totalorder %s17, 0
      %p90 = por %p88, %p89
      %p91 = scmp.ne.s32.totalorder %s77, %s78
      %p92 = scmp.eq.s32.totalorder %s18, 3
      %p93 = por %p91, %p92
      %p95 = scmp.ne.s32.totalorder %s78, %s94
      %p96 = scmp.eq.s32.totalorder %s18, 0
      %p97 = por %p95, %p96
      %s98 = ssub.s32 %s12, %s19
      %p99 = scmp.eq.s32.totalorder %s98, 0
      %s101 = sadd.s32 %s100, 1
      %s102 = scalar_select %p99, %s100, %s101
      %p105 = pneg %p99
      %p106 = scmp.eq.s32.totalorder %s12, 3
      %p107 = por %p105, %p106
      %p108 = scmp.ne.s32.totalorder %s100, %s103
      %p109 = scmp.eq.s32.totalorder %s12, 0
      %p110 = por %p108, %p109
      %p111 = scmp.ne.s32.totalorder %s100, %s103
      %p112 = scmp.eq.s32.totalorder %s17, 3
      %p113 = por %p111, %p112
      %p114 = scmp.ne.s32.totalorder %s103, %s104
      %p115 = scmp.eq.s32.totalorder %s17, 0
      %p116 = por %p114, %p115
      %p117 = scmp.ne.s32.totalorder %s103, %s104
      %p118 = scmp.eq.s32.totalorder %s18, 3
      %p119 = por %p117, %p118
      %p121 = scmp.ne.s32.totalorder %s104, %s120
      %p122 = scmp.eq.s32.totalorder %s18, 0
      %p123 = por %p121, %p122
      %p124 = scmp.le.s32.totalorder 1, %s12
      %p125 = scmp.lt.s32.totalorder %s12, 5
      %p126 = pnand %p124, %p125
      %p127 = pneg %p126
      // Predicated region
      $region9: #{tpu_custom_call.1} parent=5 // pred_check
        _
      $region10: #{tpu_custom_call.1} parent=5 // pred_check_branch
        %129 = sbr.rel (%p126) target = $region12
      $region11: #{tpu_custom_call.1} parent=5 // pred_region
        %s130 = ssub.s32 %s12, 1
      $region12: #{tpu_custom_call.1} parent=5 // pred_fallthru
        _
      %p131 = scmp.lt.s32.totalorder %s12, 4
      // Predicated region
      $region13: #{tpu_custom_call.1} parent=5 // pred_check
        %p132 = pneg %p131
      $region14: #{tpu_custom_call.1} parent=5 // pred_check_branch
        %134 = sbr.rel (%p132) target = $region16
      $region15: #{tpu_custom_call.1} parent=5 // pred_region
        // Predicated region
        $region17: #{tpu_custom_call.1} parent=15 // pred_check
          %p135 = pneg %p32
        $region18: #{tpu_custom_call.1} parent=15 // pred_check_branch
          %137 = sbr.rel (%p135) target = $region20
        $region19: #{tpu_custom_call.1} parent=15 // pred_region
          %s138 = smul.u32 2, %s12
          %p139 = scmp.lt.s32.totalorder %s138, 7
          %s140 = scalar_select %p139, %s138, 7
          %s141 = smul.addr %s140, 4
          %s142 = smul.addr %s141, 8
          %s143 = scalar_lea.vmem %s0, %s142
          %s144 = smul.u32 2, %s12
        $region20: #{tpu_custom_call.1} parent=15 // pred_fallthru
          _
        // Predicated region
        $region21: #{tpu_custom_call.1} parent=15 // pred_check
          %p145 = pneg %p58
        $region22: #{tpu_custom_call.1} parent=15 // pred_check_branch
          %147 = sbr.rel (%p145) target = $region24
        $region23: #{tpu_custom_call.1} parent=15 // pred_region
          %s148 = sand.u32 %s48, 1
          %s149 = sand.u32 %s48, 1
          %s150 = smul.addr %s149, 64
          %s151 = scalar_lea.vmem [#allocation2], %s150
          %s152 = smul.u32 2, %s12
          %s153 = smul.addr %s152, 8
          %s154 = scalar_lea.vmem %s1, %s153
          // Predicated region
          $region25: #{tpu_custom_call.1} parent=23 // pred_check
            _
          $region26: #{tpu_custom_call.1} parent=23 // pred_check_branch
            %156 = sbr.rel (0) target = $region28
          $region27: #{tpu_custom_call.1} parent=23 // pred_region
            // Predicated region
            $region29: #{tpu_custom_call.1} parent=27 // pred_check
              _
            $region30: #{tpu_custom_call.1} parent=27 // pred_check_branch
              %158 = sbr.rel (0) target = $region32
            $region31: #{tpu_custom_call.1} parent=27 // pred_region
              // Predicated region
              $region44: #{tpu_custom_call.1} parent=31 // pred_check
                _
              $region45: #{tpu_custom_call.1} parent=31 // pred_check_branch
                %187 = sbr.rel (0) target = $region47
              $region46: #{tpu_custom_call.1} parent=31 // pred_region
                loop: start=0, step=1, limit=1
                $region48: #{tpu_custom_call.1} parent=46 // loop_pre_header
                  _
                $region49: #{tpu_custom_call.1} parent=46 // loop_header
                  %s189 = sphi 0, %s193
                  %p190 = scmp.ge.s32.totalorder %s189, 1
                  %s194 = sphi %s154, %s154
                  %s195 = sphi %s151, %s151
                $region50: #{tpu_custom_call.1} parent=46 // loop_header_branch
                  %192 = sbr.rel (%p190) target = $region54
                $region51: #{tpu_custom_call.1} parent=46 // loop_body
                  %v196 = vld [vmem:[%s194] sm:$0xff]
                  %197 = vst [vmem:[%s195] sm:$0xff] %v196
                  %v198 = vld [vmem:[%s194 + $0x8] sm:$0xff]
                  %199 = vst [vmem:[%s195 + $0x8] sm:$0xff] %v198
                  %v200 = vld [vmem:[%s194 + $0x40] sm:$0xff]
                  %201 = vst [vmem:[%s195 + $0x10] sm:$0xff] %v200
                  %v202 = vld [vmem:[%s194 + $0x48] sm:$0xff]
                  %203 = vst [vmem:[%s195 + $0x18] sm:$0xff] %v202
                  %v204 = vld [vmem:[%s194 + $0x80] sm:$0xff]
                  %205 = vst [vmem:[%s195 + $0x20] sm:$0xff] %v204
                  %v206 = vld [vmem:[%s194 + $0x88] sm:$0xff]
                  %207 = vst [vmem:[%s195 + $0x28] sm:$0xff] %v206
                  %v208 = vld [vmem:[%s194 + $0xc0] sm:$0xff]
                  %209 = vst [vmem:[%s195 + $0x30] sm:$0xff] %v208
                  %v210 = vld [vmem:[%s194 + $0xc8] sm:$0xff]
                  %211 = vst [vmem:[%s195 + $0x38] sm:$0xff] %v210
                $region52: #{tpu_custom_call.1} parent=46 // loop_footer
                  %s193 = sadd.s32 1, %s189
                $region53: #{tpu_custom_call.1} parent=46 // loop_footer_branch
                  %188 = sbr.rel target = $region49
                $region54: #{tpu_custom_call.1} parent=46 // loop_exit
                  _
              $region47: #{tpu_custom_call.1} parent=31 // pred_fallthru
                _
              // Predicated region
              $region55: #{tpu_custom_call.1} parent=31 // pred_check
                _
              $region56: #{tpu_custom_call.1} parent=31 // pred_check_branch
                %213 = sbr.rel target = $region58
              $region57: #{tpu_custom_call.1} parent=31 // pred_region
                _
              $region58: #{tpu_custom_call.1} parent=31 // pred_fallthru
                _
            $region32: #{tpu_custom_call.1} parent=27 // pred_fallthru
              _
            // Predicated region
            $region33: #{tpu_custom_call.1} parent=27 // pred_check
              _
            $region34: #{tpu_custom_call.1} parent=27 // pred_check_branch
              %160 = sbr.rel target = $region36
            $region35: #{tpu_custom_call.1} parent=27 // pred_region
              loop: start=0, step=1, limit=1
              $region37: #{tpu_custom_call.1} parent=35 // loop_pre_header
                _
              $region38: #{tpu_custom_call.1} parent=35 // loop_header
                %s163 = sphi 0, %s167
                %p164 = scmp.ge.s32.totalorder %s163, 1
                %s168 = sphi %s154, %s154
                %s169 = sphi %s151, %s151
              $region39: #{tpu_custom_call.1} parent=35 // loop_header_branch
                %166 = sbr.rel (%p164) target = $region43
              $region40: #{tpu_custom_call.1} parent=35 // loop_body
                %v170 = vld [vmem:[%s168] sm:$0xff]
                %171 = vst [vmem:[%s169] sm:$0xff] %v170
                %v172 = vld [vmem:[%s168 + $0x8] sm:$0xff]
                %173 = vst [vmem:[%s169 + $0x8] sm:$0xff] %v172
                %v174 = vld [vmem:[%s168 + $0x40] sm:$0xff]
                %175 = vst [vmem:[%s169 + $0x10] sm:$0xff] %v174
                %v176 = vld [vmem:[%s168 + $0x48] sm:$0xff]
                %177 = vst [vmem:[%s169 + $0x18] sm:$0xff] %v176
                %v178 = vld [vmem:[%s168 + $0x80] sm:$0xff]
                %179 = vst [vmem:[%s169 + $0x20] sm:$0xff] %v178
                %v180 = vld [vmem:[%s168 + $0x88] sm:$0xff]
                %181 = vst [vmem:[%s169 + $0x28] sm:$0xff] %v180
                %v182 = vld [vmem:[%s168 + $0xc0] sm:$0xff]
                %183 = vst [vmem:[%s169 + $0x30] sm:$0xff] %v182
                %v184 = vld [vmem:[%s168 + $0xc8] sm:$0xff]
                %185 = vst [vmem:[%s169 + $0x38] sm:$0xff] %v184
              $region41: #{tpu_custom_call.1} parent=35 // loop_footer
                %s167 = sadd.s32 1, %s163
              $region42: #{tpu_custom_call.1} parent=35 // loop_footer_branch
                %162 = sbr.rel target = $region38
              $region43: #{tpu_custom_call.1} parent=35 // loop_exit
                _
            $region36: #{tpu_custom_call.1} parent=27 // pred_fallthru
              _
          $region28: #{tpu_custom_call.1} parent=23 // pred_fallthru
            _
          %214 = vnop
        $region24: #{tpu_custom_call.1} parent=15 // pred_fallthru
          _
        // Predicated region
        $region59: #{tpu_custom_call.1} parent=15 // pred_check
          %p215 = pneg %p84
        $region60: #{tpu_custom_call.1} parent=15 // pred_check_branch
          %217 = sbr.rel (%p215) target = $region62
        $region61: #{tpu_custom_call.1} parent=15 // pred_region
          %s218 = sand.u32 %s74, 1
          %s219 = sand.u32 %s74, 1
          %s220 = smul.addr %s219, 32
          %s221 = scalar_lea.vmem [#allocation3], %s220
          %s222 = smul.u32 2, %s12
          %s223 = smul.addr %s222, 8
          %s224 = scalar_lea.vmem %s2, %s223
          // Predicated region
          $region63: #{tpu_custom_call.1} parent=61 // pred_check
            _
          $region64: #{tpu_custom_call.1} parent=61 // pred_check_branch
            %226 = sbr.rel (0) target = $region66
          $region65: #{tpu_custom_call.1} parent=61 // pred_region
            // Predicated region
            $region67: #{tpu_custom_call.1} parent=65 // pred_check
              _
            $region68: #{tpu_custom_call.1} parent=65 // pred_check_branch
              %228 = sbr.rel (0) target = $region70
            $region69: #{tpu_custom_call.1} parent=65 // pred_region
              // Predicated region
              $region82: #{tpu_custom_call.1} parent=69 // pred_check
                _
              $region83: #{tpu_custom_call.1} parent=69 // pred_check_branch
                %249 = sbr.rel (0) target = $region85
              $region84: #{tpu_custom_call.1} parent=69 // pred_region
                loop: start=0, step=1, limit=1
                $region86: #{tpu_custom_call.1} parent=84 // loop_pre_header
                  _
                $region87: #{tpu_custom_call.1} parent=84 // loop_header
                  %s251 = sphi 0, %s255
                  %p252 = scmp.ge.s32.totalorder %s251, 1
                  %s256 = sphi %s224, %s224
                  %s257 = sphi %s221, %s221
                $region88: #{tpu_custom_call.1} parent=84 // loop_header_branch
                  %254 = sbr.rel (%p252) target = $region92
                $region89: #{tpu_custom_call.1} parent=84 // loop_body
                  %v258 = vld [vmem:[%s256] sm:$0xff]
                  %259 = vst [vmem:[%s257] sm:$0xff] %v258
                  %v260 = vld [vmem:[%s256 + $0x8] sm:$0xff]
                  %261 = vst [vmem:[%s257 + $0x8] sm:$0xff] %v260
                  %v262 = vld [vmem:[%s256 + $0x40] sm:$0xff]
                  %263 = vst [vmem:[%s257 + $0x10] sm:$0xff] %v262
                  %v264 = vld [vmem:[%s256 + $0x48] sm:$0xff]
                  %265 = vst [vmem:[%s257 + $0x18] sm:$0xff] %v264
                $region90: #{tpu_custom_call.1} parent=84 // loop_footer
                  %s255 = sadd.s32 1, %s251
                $region91: #{tpu_custom_call.1} parent=84 // loop_footer_branch
                  %250 = sbr.rel target = $region87
                $region92: #{tpu_custom_call.1} parent=84 // loop_exit
                  _
              $region85: #{tpu_custom_call.1} parent=69 // pred_fallthru
                _
              // Predicated region
              $region93: #{tpu_custom_call.1} parent=69 // pred_check
                _
              $region94: #{tpu_custom_call.1} parent=69 // pred_check_branch
                %267 = sbr.rel target = $region96
              $region95: #{tpu_custom_call.1} parent=69 // pred_region
                _
              $region96: #{tpu_custom_call.1} parent=69 // pred_fallthru
                _
            $region70: #{tpu_custom_call.1} parent=65 // pred_fallthru
              _
            // Predicated region
            $region71: #{tpu_custom_call.1} parent=65 // pred_check
              _
            $region72: #{tpu_custom_call.1} parent=65 // pred_check_branch
              %230 = sbr.rel target = $region74
            $region73: #{tpu_custom_call.1} parent=65 // pred_region
              loop: start=0, step=1, limit=1
              $region75: #{tpu_custom_call.1} parent=73 // loop_pre_header
                _
              $region76: #{tpu_custom_call.1} parent=73 // loop_header
                %s233 = sphi 0, %s237
                %p234 = scmp.ge.s32.totalorder %s233, 1
                %s238 = sphi %s224, %s224
                %s239 = sphi %s221, %s221
              $region77: #{tpu_custom_call.1} parent=73 // loop_header_branch
                %236 = sbr.rel (%p234) target = $region81
              $region78: #{tpu_custom_call.1} parent=73 // loop_body
                %v240 = vld [vmem:[%s238] sm:$0xff]
                %241 = vst [vmem:[%s239] sm:$0xff] %v240
                %v242 = vld [vmem:[%s238 + $0x8] sm:$0xff]
                %243 = vst [vmem:[%s239 + $0x8] sm:$0xff] %v242
                %v244 = vld [vmem:[%s238 + $0x40] sm:$0xff]
                %245 = vst [vmem:[%s239 + $0x10] sm:$0xff] %v244
                %v246 = vld [vmem:[%s238 + $0x48] sm:$0xff]
                %247 = vst [vmem:[%s239 + $0x18] sm:$0xff] %v246
              $region79: #{tpu_custom_call.1} parent=73 // loop_footer
                %s237 = sadd.s32 1, %s233
              $region80: #{tpu_custom_call.1} parent=73 // loop_footer_branch
                %232 = sbr.rel target = $region76
              $region81: #{tpu_custom_call.1} parent=73 // loop_exit
                _
            $region74: #{tpu_custom_call.1} parent=65 // pred_fallthru
              _
          $region66: #{tpu_custom_call.1} parent=61 // pred_fallthru
            _
          %268 = vnop
        $region62: #{tpu_custom_call.1} parent=15 // pred_fallthru
          _
      $region16: #{tpu_custom_call.1} parent=5 // pred_fallthru
        _
      %p269 = scmp.le.s32.totalorder 1, %s12
      %p270 = scmp.lt.s32.totalorder %s12, 5
      %p271 = pnand %p269, %p270
      %p272 = pneg %p271
      // Predicated region
      $region97: #{tpu_custom_call.1} parent=5 // pred_check
        _
      $region98: #{tpu_custom_call.1} parent=5 // pred_check_branch
        %274 = sbr.rel (%p271) target = $region100
      $region99: #{tpu_custom_call.1} parent=5 // pred_region
        %s275 = ssub.s32 %s12, 1
        %s276 = sand.u32 %s51, 1
        %s277 = sand.u32 %s51, 1
        %s278 = smul.addr %s277, 64
        %s279 = scalar_lea.vmem [#allocation2], %s278
        // Predicated region
        $region101: #{tpu_custom_call.1} parent=99 // pred_check
          %p280 = pneg %p64
        $region102: #{tpu_custom_call.1} parent=99 // pred_check_branch
          %282 = sbr.rel (%p280) target = $region104
        $region103: #{tpu_custom_call.1} parent=99 // pred_region
          _
        $region104: #{tpu_custom_call.1} parent=99 // pred_fallthru
          _
        %s283 = sand.u32 %s77, 1
        %s284 = sand.u32 %s77, 1
        %s285 = smul.addr %s284, 32
        %s286 = scalar_lea.vmem [#allocation3], %s285
        // Predicated region
        $region105: #{tpu_custom_call.1} parent=99 // pred_check
          %p287 = pneg %p90
        $region106: #{tpu_custom_call.1} parent=99 // pred_check_branch
          %289 = sbr.rel (%p287) target = $region108
        $region107: #{tpu_custom_call.1} parent=99 // pred_region
          _
        $region108: #{tpu_custom_call.1} parent=99 // pred_fallthru
          _
        %s290 = smul.u32 2, %s17
        %p291 = scmp.lt.s32.totalorder %s290, 7
        %s292 = scalar_select %p291, %s290, 7
        %s293 = smul.addr %s292, 4
        %s294 = smul.addr %s293, 8
        %s295 = scalar_lea.vmem %s0, %s294
        %p296 = pneg %p38
        %p297 = pneg %p35
        %s298 = sand.u32 %s51, 1
        %s299 = sand.u32 %s51, 1
        %s300 = smul.addr %s299, 64
        %s301 = scalar_lea.vmem [#allocation2], %s300
        %p302 = pneg %p64
        %p303 = pneg %p61
        %s304 = sand.u32 %s77, 1
        %s305 = sand.u32 %s77, 1
        %s306 = smul.addr %s305, 32
        %s307 = scalar_lea.vmem [#allocation3], %s306
        %p308 = pneg %p90
        %p309 = pneg %p87
        %p310 = pneg %p116
        %p311 = pneg %p113
        %s312 = sand.u32 %s103, 1
        %s313 = scalar_lea.sflag [#allocation5], %s312
        %s314 = sand.u32 %s103, 1
        %s315 = smul.addr %s314, 64
        %s316 = scalar_lea.vmem [#allocation4], %s315
        %s317 = smul.u32 2, %s17
        %p318 = scmp.lt.s32.totalorder %s317, 7
        %s319 = scalar_select %p318, %s317, 7
        %s320 = smul.addr %s319, 4
        %s321 = smul.addr %s320, 8
        %s322 = scalar_lea.vmem %s0, %s321
        %s323 = smul.u32 2, %s17
        %s324 = smul.u32 2, %s17
        %s325 = smul.u32 2, %s17
        %s326 = smul.u32 2, %s17
        %v327 = vld [vmem:[%s322] sm:$0xff]
        %v328 = vld [vmem:[%s322 + $0x8] sm:$0xff]
        %v329 = vld [vmem:[%s322 + $0x10] sm:$0xff]
        %v330 = vld [vmem:[%s322 + $0x18] sm:$0xff]
        %v331 = vld [vmem:[%s322 + $0x20] sm:$0xff]
        %v332 = vld [vmem:[%s322 + $0x28] sm:$0xff]
        %v333 = vld [vmem:[%s322 + $0x30] sm:$0xff]
        %v334 = vld [vmem:[%s322 + $0x38] sm:$0xff]
        %v335 = vld [vmem:[%s286] sm:$0xff]
        %v336 = vld [vmem:[%s286 + $0x8] sm:$0xff]
        %v337 = vld [vmem:[%s279] sm:$0xff]
        %v338 = vld [vmem:[%s279 + $0x8] sm:$0xff]
        %340 = vset.pattern.permute.xlu0 0
        %341 = vperm.xlu0 %340, %v337
        %v342 = vpop.permute.xlu0 %341
        %345 = vset.pattern.permute.xlu0 0
        %346 = vperm.xlu0 %345, %v338
        %v347 = vpop.permute.xlu0 %346
        %v349 = vmul.f32 %v342, %v327
        %v350 = vmul.f32 %v342, %v328
        %v351 = vmul.f32 %v347, %v331
        %v352 = vmul.f32 %v347, %v332
        %354 = vset.pattern.permute.xlu0 0
        %355 = vperm.xlu0 %354, %v335
        %v356 = vpop.permute.xlu0 %355
        %359 = vset.pattern.permute.xlu0 0
        %360 = vperm.xlu0 %359, %v336
        %v361 = vpop.permute.xlu0 %360
        %v363 = vadd.f32 %v356, %v349
        %v364 = vadd.f32 %v356, %v350
        %v365 = vadd.f32 %v361, %v351
        %v366 = vadd.f32 %v361, %v352
        %s367 = scalar_lea.vmem %s279, 32 [#allocation2]
        %v368 = vld [vmem:[%s367] sm:$0xff]
        %v369 = vld [vmem:[%s367 + $0x8] sm:$0xff]
        %371 = vset.pattern.permute.xlu0 0
        %372 = vperm.xlu0 %371, %v368
        %v373 = vpop.permute.xlu0 %372
        %376 = vset.pattern.permute.xlu0 0
        %377 = vperm.xlu0 %376, %v369
        %v378 = vpop.permute.xlu0 %377
        %v380 = vmul.f32 %v373, %v329
        %v381 = vmul.f32 %v373, %v330
        %v382 = vmul.f32 %v378, %v333
        %v383 = vmul.f32 %v378, %v334
        %v384 = vadd.f32 %v363, %v380
        %v385 = vadd.f32 %v364, %v381
        %v386 = vadd.f32 %v365, %v382
        %v387 = vadd.f32 %v366, %v383
        %v388 = vxor.u32 %v384, 2147483648
        %v389 = vxor.u32 %v385, 2147483648
        %v390 = vxor.u32 %v386, 2147483648
        %v391 = vxor.u32 %v387, 2147483648
        %v392 = vmul.f32 %v388, 1.442695
        %v393 = vpow.pop %v392
        %v394 = vmul.f32 %v389, 1.442695
        %v395 = vpow.pop %v394
        %v396 = vmul.f32 %v390, 1.442695
        %v397 = vpow.pop %v396
        %v398 = vmul.f32 %v391, 1.442695
        %v399 = vpow.pop %v398
        %v400 = vadd.f32 %v393, 1.0
        %v401 = vadd.f32 %v395, 1.0
        %v402 = vadd.f32 %v397, 1.0
        %v403 = vadd.f32 %v399, 1.0
        %v404 = vrcp.pop %v400
        %v405 = vmul.f32 1.0, %v404
        %v406 = vrcp.pop %v401
        %v407 = vmul.f32 1.0, %v406
        %v408 = vrcp.pop %v402
        %v409 = vmul.f32 1.0, %v408
        %v410 = vrcp.pop %v403
        %v411 = vmul.f32 1.0, %v410
        %v412 = vmul.f32 %v384, %v405
        %v413 = vmul.f32 %v385, %v407
        %v414 = vmul.f32 %v386, %v409
        %v415 = vmul.f32 %v387, %v411
        %416 = vst [vmem:[%s316] sm:$0xff] %v412
        %417 = vst [vmem:[%s316 + $0x8] sm:$0xff] %v413
        %418 = vst [vmem:[%s316 + $0x20] sm:$0xff] %v414
        %419 = vst [vmem:[%s316 + $0x28] sm:$0xff] %v415
        %s420 = scalar_lea.vmem %s286, 16 [#allocation3]
        %v421 = vld [vmem:[%s420] sm:$0xff]
        %v422 = vld [vmem:[%s420 + $0x8] sm:$0xff]
        %s423 = scalar_lea.vmem %s279, 16 [#allocation2]
        %v424 = vld [vmem:[%s423] sm:$0xff]
        %v425 = vld [vmem:[%s423 + $0x8] sm:$0xff]
        %427 = vset.pattern.permute.xlu0 0
        %428 = vperm.xlu0 %427, %v424
        %v429 = vpop.permute.xlu0 %428
        %432 = vset.pattern.permute.xlu0 0
        %433 = vperm.xlu0 %432, %v425
        %v434 = vpop.permute.xlu0 %433
        %v436 = vmul.f32 %v429, %v327
        %v437 = vmul.f32 %v429, %v328
        %v438 = vmul.f32 %v434, %v331
        %v439 = vmul.f32 %v434, %v332
        %441 = vset.pattern.permute.xlu0 0
        %442 = vperm.xlu0 %441, %v421
        %v443 = vpop.permute.xlu0 %442
        %446 = vset.pattern.permute.xlu0 0
        %447 = vperm.xlu0 %446, %v422
        %v448 = vpop.permute.xlu0 %447
        %v450 = vadd.f32 %v443, %v436
        %v451 = vadd.f32 %v443, %v437
        %v452 = vadd.f32 %v448, %v438
        %v453 = vadd.f32 %v448, %v439
        %s454 = scalar_lea.vmem %s279, 48 [#allocation2]
        %v455 = vld [vmem:[%s454] sm:$0xff]
        %v456 = vld [vmem:[%s454 + $0x8] sm:$0xff]
        %458 = vset.pattern.permute.xlu0 0
        %459 = vperm.xlu0 %458, %v455
        %v460 = vpop.permute.xlu0 %459
        %463 = vset.pattern.permute.xlu0 0
        %464 = vperm.xlu0 %463, %v456
        %v465 = vpop.permute.xlu0 %464
        %v467 = vmul.f32 %v460, %v329
        %v468 = vmul.f32 %v460, %v330
        %v469 = vmul.f32 %v465, %v333
        %v470 = vmul.f32 %v465, %v334
        %v471 = vadd.f32 %v450, %v467
        %v472 = vadd.f32 %v451, %v468
        %v473 = vadd.f32 %v452, %v469
        %v474 = vadd.f32 %v453, %v470
        %v475 = vxor.u32 %v471, 2147483648
        %v476 = vxor.u32 %v472, 2147483648
        %v477 = vxor.u32 %v473, 2147483648
        %v478 = vxor.u32 %v474, 2147483648
        %v479 = vmul.f32 %v475, 1.442695
        %v480 = vpow.pop %v479
        %v481 = vmul.f32 %v476, 1.442695
        %v482 = vpow.pop %v481
        %v483 = vmul.f32 %v477, 1.442695
        %v484 = vpow.pop %v483
        %v485 = vmul.f32 %v478, 1.442695
        %v486 = vpow.pop %v485
        %v487 = vadd.f32 %v480, 1.0
        %v488 = vadd.f32 %v482, 1.0
        %v489 = vadd.f32 %v484, 1.0
        %v490 = vadd.f32 %v486, 1.0
        %v491 = vrcp.pop %v487
        %v492 = vmul.f32 1.0, %v491
        %v493 = vrcp.pop %v488
        %v494 = vmul.f32 1.0, %v493
        %v495 = vrcp.pop %v489
        %v496 = vmul.f32 1.0, %v495
        %v497 = vrcp.pop %v490
        %v498 = vmul.f32 1.0, %v497
        %v499 = vmul.f32 %v471, %v492
        %v500 = vmul.f32 %v472, %v494
        %v501 = vmul.f32 %v473, %v496
        %v502 = vmul.f32 %v474, %v498
        %503 = vst [vmem:[%s316 + $0x10] sm:$0xff] %v499
        %504 = vst [vmem:[%s316 + $0x18] sm:$0xff] %v500
        %505 = vst [vmem:[%s316 + $0x30] sm:$0xff] %v501
        %506 = vst [vmem:[%s316 + $0x38] sm:$0xff] %v502
        %s507 = sand.u32 %s103, 1
        %s508 = scalar_lea.sflag [#allocation5], %s507
        %s509 = sand.u32 %s103, 1
        %s510 = smul.addr %s509, 64
        %s511 = scalar_lea.vmem [#allocation4], %s510
        // Predicated region
        $region109: #{tpu_custom_call.1} parent=99 // pred_check
          %p512 = pneg %p113
        $region110: #{tpu_custom_call.1} parent=99 // pred_check_branch
          %514 = sbr.rel (%p512) target = $region112
        $region111: #{tpu_custom_call.1} parent=99 // pred_region
          %s515 = smul.u32 2, %s17
          %s517 = ssub.s32 1024, 1024
          %518 = vsyncadd %s508, %s517
          %s519 = smul.addr %s515, 4
          %s520 = smul.addr %s519, 128
          %s521 = scalar_lea.hbm %s3, %s520
          %s522 = sshll.u32 %s511, 4
          %s523 = int_to_ptr.vmem [resolvable:$true] %s522
          %528 = dma.vmem_to_hbm [thread:$0]  %s523, 1024, %s521, %s508, 512, 512, 32
        $region112: #{tpu_custom_call.1} parent=99 // pred_fallthru
          _
      $region100: #{tpu_custom_call.1} parent=5 // pred_fallthru
        _
      %p529 = scmp.le.s32.totalorder 2, %s12
      // Predicated region
      $region113: #{tpu_custom_call.1} parent=5 // pred_check
        %p530 = pneg %p529
      $region114: #{tpu_custom_call.1} parent=5 // pred_check_branch
        %532 = sbr.rel (%p530) target = $region116
      $region115: #{tpu_custom_call.1} parent=5 // pred_region
        %s533 = ssub.s32 %s12, 2
        // Predicated region
        $region117: #{tpu_custom_call.1} parent=115 // pred_check
          %p534 = pneg %p119
        $region118: #{tpu_custom_call.1} parent=115 // pred_check_branch
          %536 = sbr.rel (%p534) target = $region120
        $region119: #{tpu_custom_call.1} parent=115 // pred_region
          %s537 = sand.u32 %s104, 1
          %s538 = scalar_lea.sflag [#allocation5], %s537
          %s539 = sand.u32 %s104, 1
          %s540 = smul.addr %s539, 64
          %s541 = scalar_lea.vmem [#allocation4], %s540
          %542 = dma.done %s538, 1024
        $region120: #{tpu_custom_call.1} parent=115 // pred_fallthru
          _
      $region116: #{tpu_custom_call.1} parent=5 // pred_fallthru
        _
    $region6: #{tpu_custom_call.1} parent=1 // loop_footer
      %s16 = sadd.s32 1, %s12
    $region7: #{tpu_custom_call.1} parent=1 // loop_footer_branch
      %11 = sbr.rel target = $region3
    $region8: #{tpu_custom_call.1} parent=1 // loop_exit
      _
    %543 = vsyncpa [#allocation5], 1
    %s544 = scalar_lea.sflag [#allocation5], 1
    %545 = vsyncpa %s544, 1

</llo_original>
